<compile_context>
chip_gen: v6e
topology: v6e:2x2x1
jax: 0.10.0
libtpu: 0.0.40
codegen_flags: <defaults>
</compile_context>

<pallas_src>
import jax
import jax.numpy as jnp
from jax.experimental import pallas as pl
from jax.experimental.pallas import tpu as pltpu

STATE_DIM = 8      # LunarLander-v3 observation_space.shape[0]
ACTION_DIM = 4     # LunarLander-v3 action_space.n
HIDDEN = 128
OUT_PAD = 128      # lane-dense padded output width (>= ACTION_DIM)
TILE_B = 128       # batch rows per grid step (<=256 to avoid vreg spills)


def qnetwork_kernel(x_ref, w1_ref, b1_ref, w2_ref, b2_ref, w3_ref, b3_ref, o_ref):
    # bf16 MXU operands, f32 accumulation; bias-add / ReLU in f32.
    x = x_ref[...]                                                        # (TILE_B, 8) bf16
    h1 = jnp.dot(x, w1_ref[...], preferred_element_type=jnp.float32)      # (TILE_B, 128) f32
    h1 = jnp.maximum(h1 + b1_ref[...], 0.0)
    h2 = jnp.dot(h1.astype(jnp.bfloat16), w2_ref[...],
                 preferred_element_type=jnp.float32)                      # (TILE_B, 128) f32
    h2 = jnp.maximum(h2 + b2_ref[...], 0.0)
    q = jnp.dot(h2.astype(jnp.bfloat16), w3_ref[...],
                preferred_element_type=jnp.float32)                       # (TILE_B, 128) f32
    o_ref[...] = (q + b3_ref[...]).astype(o_ref.dtype)                    # unmasked 128-lane store


def qnetwork_forward(x, params, tile_b=TILE_B):
    """x: (B, STATE_DIM) f32.  Returns (B, ACTION_DIM) f32 Q-values."""
    w1, b1, w2, b2, w3, b3 = params
    batch = x.shape[0]

    # MXU operands in bf16 (halves weight/x DMA bytes; f32 accumulate in-kernel).
    xb = x.astype(jnp.bfloat16)
    w1b = w1.astype(jnp.bfloat16)
    w2b = w2.astype(jnp.bfloat16)

    # Zero-pad the last layer to a lane-dense (128-wide) output.  Padded
    # columns are exactly zero, so the sliced Q-values are unchanged.
    w3p = jnp.zeros((HIDDEN, OUT_PAD), jnp.bfloat16).at[:, :ACTION_DIM].set(
        w3.astype(jnp.bfloat16))
    b3p = jnp.zeros((1, OUT_PAD), jnp.float32).at[:, :ACTION_DIM].set(b3)

    # Pad the batch to a multiple of the tile so the last tile is in range.
    n_tiles = pl.cdiv(batch, tile_b)
    padded = n_tiles * tile_b
    if padded != batch:
        xb = jnp.pad(xb, ((0, padded - batch), (0, 0)))

    flops = 2 * padded * (STATE_DIM * HIDDEN + HIDDEN * HIDDEN + HIDDEN * OUT_PAD)
    bytes_accessed = (
        padded * STATE_DIM * 2                                   # x (bf16)
        + (STATE_DIM * HIDDEN + HIDDEN * HIDDEN + HIDDEN * OUT_PAD) * 2  # weights (bf16)
        + (HIDDEN + HIDDEN + OUT_PAD) * 4                        # biases (f32)
        + padded * OUT_PAD * 4                                   # output (f32)
    )

    resident = lambda i: (0, 0)   # weights/biases: same block every step -> no re-DMA
    out = pl.pallas_call(
        qnetwork_kernel,
        out_shape=jax.ShapeDtypeStruct((padded, OUT_PAD), jnp.float32),
        grid=(n_tiles,),
        in_specs=[
            pl.BlockSpec((tile_b, STATE_DIM), lambda i: (i, 0)),   # x tile (pipelined)
            pl.BlockSpec((STATE_DIM, HIDDEN), resident),           # w1
            pl.BlockSpec((1, HIDDEN), resident),                   # b1
            pl.BlockSpec((HIDDEN, HIDDEN), resident),               # w2
            pl.BlockSpec((1, HIDDEN), resident),                   # b2
            pl.BlockSpec((HIDDEN, OUT_PAD), resident),              # w3 (padded)
            pl.BlockSpec((1, OUT_PAD), resident),                   # b3 (padded)
        ],
        out_specs=pl.BlockSpec((tile_b, OUT_PAD), lambda i: (i, 0)),
        compiler_params=pltpu.CompilerParams(
            dimension_semantics=("parallel",)),                     # megacore on v7x
        cost_estimate=pl.CostEstimate(
            flops=flops, transcendentals=0, bytes_accessed=bytes_accessed),
    )(xb, w1b, b1, w2b, b2, w3p, b3p)

    return out[:batch, :ACTION_DIM]


def init_params(key):
    """Deterministic PyTorch-style init (uniform(-1/sqrt(fan_in), 1/sqrt(fan_in)))."""
    def linear(key, fan_in, fan_out):
        kw, kb = jax.random.split(key)
        bound = 1.0 / jnp.sqrt(float(fan_in))
        # Stored as (in, out) so the kernel does x @ W (equivalent to PyTorch x @ W.T).
        w = jax.random.uniform(kw, (fan_in, fan_out), jnp.float32, -bound, bound)
        b = jax.random.uniform(kb, (1, fan_out), jnp.float32, -bound, bound)
        return w, b

    k1, k2, k3 = jax.random.split(key, 3)
    w1, b1 = linear(k1, STATE_DIM, HIDDEN)
    w2, b2 = linear(k2, HIDDEN, HIDDEN)
    w3, b3 = linear(k3, HIDDEN, ACTION_DIM)
    return w1, b1, w2, b2, w3, b3


def reference_forward(x, params):
    """Pure-JAX reference using the same bf16-operand / f32-accumulate recipe."""
    w1, b1, w2, b2, w3, b3 = params
    xb = x.astype(jnp.bfloat16)
    h1 = jnp.maximum(
        jnp.dot(xb, w1.astype(jnp.bfloat16), preferred_element_type=jnp.float32) + b1, 0.0)
    h2 = jnp.maximum(
        jnp.dot(h1.astype(jnp.bfloat16), w2.astype(jnp.bfloat16),
                preferred_element_type=jnp.float32) + b2, 0.0)
    return jnp.dot(h2.astype(jnp.bfloat16), w3.astype(jnp.bfloat16),
                   preferred_element_type=jnp.float32) + b3


if __name__ == "__main__":
    key = jax.random.PRNGKey(0)
    k_params, k_x, k_x2 = jax.random.split(key, 3)
    params = init_params(k_params)

    # Small smoke test (batch=8, padded to one 128-row tile in the wrapper).
    batch = 8
    x = jax.random.normal(k_x, (batch, STATE_DIM), jnp.float32)
    q = jax.block_until_ready(qnetwork_forward(x, params))
    q_ref = reference_forward(x, params)
    assert q.shape == (batch, ACTION_DIM)
    assert jnp.allclose(q, q_ref, atol=1e-2, rtol=1e-2), "mismatch vs JAX reference (batch=8)"

    # Multi-tile + remainder path (batch=260 -> 3 grid steps, last tile padded).
    batch2 = 260
    x2 = jax.random.normal(k_x2, (batch2, STATE_DIM), jnp.float32)
    q2 = jax.block_until_ready(qnetwork_forward(x2, params))
    q2_ref = reference_forward(x2, params)
    assert q2.shape == (batch2, ACTION_DIM)
    assert jnp.allclose(q2, q2_ref, atol=1e-2, rtol=1e-2), "mismatch vs JAX reference (batch=260)"

    print("KERNEL_OK")
</pallas_src>

<mosaic_0001>
module attributes {stable_mosaic.version = 11 : i64} {
  func.func @qnetwork_kernel(%arg0: i32, %arg1: memref<128x8xbf16, #tpu.memory_space<vmem>>, %arg2: memref<8x128xbf16, #tpu.memory_space<vmem>>, %arg3: memref<1x128xf32, #tpu.memory_space<vmem>>, %arg4: memref<128x128xbf16, #tpu.memory_space<vmem>>, %arg5: memref<1x128xf32, #tpu.memory_space<vmem>>, %arg6: memref<128x128xbf16, #tpu.memory_space<vmem>>, %arg7: memref<1x128xf32, #tpu.memory_space<vmem>>, %arg8: memref<128x128xf32, #tpu.memory_space<vmem>>) attributes {dimension_semantics = [#tpu.dimension_semantics<parallel>], iteration_bounds = array<i64: 1>, scalar_prefetch = 0 : i64, scratch_operands = 0 : i64, tpu.core_type = #tpu.core_type<tc>, window_params = [{transform_indices = @transform_0, window_bounds = array<i64: 128, 8>}, {pipeline_mode = #tpu.pipeline_mode<synchronous>, transform_indices = @transform_1, window_bounds = array<i64: 8, 128>}, {pipeline_mode = #tpu.pipeline_mode<synchronous>, transform_indices = @transform_2, window_bounds = array<i64: 1, 128>}, {pipeline_mode = #tpu.pipeline_mode<synchronous>, transform_indices = @transform_3, window_bounds = array<i64: 128, 128>}, {pipeline_mode = #tpu.pipeline_mode<synchronous>, transform_indices = @transform_4, window_bounds = array<i64: 1, 128>}, {pipeline_mode = #tpu.pipeline_mode<synchronous>, transform_indices = @transform_5, window_bounds = array<i64: 128, 128>}, {pipeline_mode = #tpu.pipeline_mode<synchronous>, transform_indices = @transform_6, window_bounds = array<i64: 1, 128>}, {transform_indices = @transform_7, window_bounds = array<i64: 128, 128>}]} {
    %c0 = arith.constant 0 : index
    %c0_0 = arith.constant 0 : index
    %0 = vector.load %arg1[%c0, %c0_0] : memref<128x8xbf16, #tpu.memory_space<vmem>>, vector<128x8xbf16>
    %c0_1 = arith.constant 0 : index
    %c0_2 = arith.constant 0 : index
    %1 = vector.load %arg2[%c0_1, %c0_2] : memref<8x128xbf16, #tpu.memory_space<vmem>>, vector<8x128xbf16>
    %cst = arith.constant dense<0.000000e+00> : vector<128x128xf32>
    %2 = tpu.matmul %0, %1, %cst {dimension_numbers = #tpu.dot_dimension_numbers<[1], [0], [0], [1], [0, 0, 1, 1], [], []>} : vector<128x8xbf16>, vector<8x128xbf16>, vector<128x128xf32> -> vector<128x128xf32>
    %c0_3 = arith.constant 0 : index
    %c0_4 = arith.constant 0 : index
    %3 = vector.load %arg3[%c0_3, %c0_4] : memref<1x128xf32, #tpu.memory_space<vmem>>, vector<1x128xf32>
    %4 = vector.broadcast %3 : vector<1x128xf32> to vector<128x128xf32>
    %5 = arith.addf %2, %4 : vector<128x128xf32>
    %cst_5 = arith.constant 0.000000e+00 : f32
    %6 = vector.broadcast %cst_5 : f32 to vector<128x128xf32>
    %7 = arith.maximumf %5, %6 : vector<128x128xf32>
    %8 = arith.truncf %7 : vector<128x128xf32> to vector<128x128xbf16>
    %c0_6 = arith.constant 0 : index
    %c0_7 = arith.constant 0 : index
    %9 = vector.load %arg4[%c0_6, %c0_7] : memref<128x128xbf16, #tpu.memory_space<vmem>>, vector<128x128xbf16>
    %cst_8 = arith.constant dense<0.000000e+00> : vector<128x128xf32>
    %10 = tpu.matmul %8, %9, %cst_8 {dimension_numbers = #tpu.dot_dimension_numbers<[1], [0], [0], [1], [0, 0, 1, 1], [], []>} : vector<128x128xbf16>, vector<128x128xbf16>, vector<128x128xf32> -> vector<128x128xf32>
    %c0_9 = arith.constant 0 : index
    %c0_10 = arith.constant 0 : index
    %11 = vector.load %arg5[%c0_9, %c0_10] : memref<1x128xf32, #tpu.memory_space<vmem>>, vector<1x128xf32>
    %12 = vector.broadcast %11 : vector<1x128xf32> to vector<128x128xf32>
    %13 = arith.addf %10, %12 : vector<128x128xf32>
    %cst_11 = arith.constant 0.000000e+00 : f32
    %14 = vector.broadcast %cst_11 : f32 to vector<128x128xf32>
    %15 = arith.maximumf %13, %14 : vector<128x128xf32>
    %16 = arith.truncf %15 : vector<128x128xf32> to vector<128x128xbf16>
    %c0_12 = arith.constant 0 : index
    %c0_13 = arith.constant 0 : index
    %17 = vector.load %arg6[%c0_12, %c0_13] : memref<128x128xbf16, #tpu.memory_space<vmem>>, vector<128x128xbf16>
    %cst_14 = arith.constant dense<0.000000e+00> : vector<128x128xf32>
    %18 = tpu.matmul %16, %17, %cst_14 {dimension_numbers = #tpu.dot_dimension_numbers<[1], [0], [0], [1], [0, 0, 1, 1], [], []>} : vector<128x128xbf16>, vector<128x128xbf16>, vector<128x128xf32> -> vector<128x128xf32>
    %c0_15 = arith.constant 0 : index
    %c0_16 = arith.constant 0 : index
    %19 = vector.load %arg7[%c0_15, %c0_16] : memref<1x128xf32, #tpu.memory_space<vmem>>, vector<1x128xf32>
    %20 = vector.broadcast %19 : vector<1x128xf32> to vector<128x128xf32>
    %21 = arith.addf %18, %20 : vector<128x128xf32>
    %c0_17 = arith.constant 0 : index
    %c0_18 = arith.constant 0 : index
    %22 = vector.load %arg8[%c0_17, %c0_18] : memref<128x128xf32, #tpu.memory_space<vmem>>, vector<128x128xf32>
    tpu.vector_store %arg8[%c0_17, %c0_18], %21 {strides = array<i32>} : memref<128x128xf32, #tpu.memory_space<vmem>>, vector<128x128xf32>,
    return
  }
  func.func @transform_0(%arg0: i32) -> (i32, i32) {
    %c0_i32 = arith.constant 0 : i32
    %c0_i32_0 = arith.constant 0 : i32
    return %arg0, %c0_i32 : i32, i32
  }
  func.func @transform_1(%arg0: i32) -> (i32, i32) {
    %c0_i32 = arith.constant 0 : i32
    %c0_i32_0 = arith.constant 0 : i32
    %c0_i32_1 = arith.constant 0 : i32
    return %c0_i32, %c0_i32_0 : i32, i32
  }
  func.func @transform_2(%arg0: i32) -> (i32, i32) {
    %c0_i32 = arith.constant 0 : i32
    %c0_i32_0 = arith.constant 0 : i32
    %c0_i32_1 = arith.constant 0 : i32
    return %c0_i32, %c0_i32_0 : i32, i32
  }
  func.func @transform_3(%arg0: i32) -> (i32, i32) {
    %c0_i32 = arith.constant 0 : i32
    %c0_i32_0 = arith.constant 0 : i32
    %c0_i32_1 = arith.constant 0 : i32
    return %c0_i32, %c0_i32_0 : i32, i32
  }
  func.func @transform_4(%arg0: i32) -> (i32, i32) {
    %c0_i32 = arith.constant 0 : i32
    %c0_i32_0 = arith.constant 0 : i32
    %c0_i32_1 = arith.constant 0 : i32
    return %c0_i32, %c0_i32_0 : i32, i32
  }
  func.func @transform_5(%arg0: i32) -> (i32, i32) {
    %c0_i32 = arith.constant 0 : i32
    %c0_i32_0 = arith.constant 0 : i32
    %c0_i32_1 = arith.constant 0 : i32
    return %c0_i32, %c0_i32_0 : i32, i32
  }
  func.func @transform_6(%arg0: i32) -> (i32, i32) {
    %c0_i32 = arith.constant 0 : i32
    %c0_i32_0 = arith.constant 0 : i32
    %c0_i32_1 = arith.constant 0 : i32
    return %c0_i32, %c0_i32_0 : i32, i32
  }
  func.func @transform_7(%arg0: i32) -> (i32, i32) {
    %c0_i32 = arith.constant 0 : i32
    %c0_i32_0 = arith.constant 0 : i32
    return %arg0, %c0_i32 : i32, i32
  }
}

</mosaic_0001>

<llo_original>
// kernel: tpu_custom_call.1
$region0: #{tpu_custom_call.1}
  #allocation0 [shape = 'u32[]', space=smem, size = 0x4, offset = 0x4, fixed_abs, tag = 'smem constant byte address 0x4 - core index']
  #allocation1 [shape = 'u32[144,128]{1,0:T(1,128)}', space=vmem, size = 0x12000, scoped, tag = 'internal scratch']
  %s0 = inlined_call_operand.vmem [shape: bf16[128,8], index: 0, kind: input, shape index: {}]
  %s1 = inlined_call_operand.vmem [shape: bf16[8,128], index: 1, kind: input, shape index: {}]
  %s2 = inlined_call_operand.vmem [shape: f32[1,128], index: 2, kind: input, shape index: {}]
  %s3 = inlined_call_operand.vmem [shape: bf16[128,128], index: 3, kind: input, shape index: {}]
  %s4 = inlined_call_operand.vmem [shape: f32[1,128], index: 4, kind: input, shape index: {}]
  %s5 = inlined_call_operand.hbm [shape: bf16[128,128], index: 5, kind: input, shape index: {}]
  %s6 = inlined_call_operand.vmem [shape: f32[1,128], index: 6, kind: input, shape index: {}]
  %s7 = inlined_call_operand.hbm [shape: f32[128,128], index: 7, kind: output, shape index: {}]
  %s8 = sld [smem:[#allocation0]]
  $region42: #{tpu_custom_call.1} parent=0
    _
  %s10 = ssub.s32 1, %s8
  %s11 = scalar_select 0, %s10, %s8
  $region1: #{tpu_custom_call.1} parent=0
    #allocation2 [shape = 'u8[32768]{0}', space=vmem, size = 0x8000, scoped, tag = 'input window, operand 5, single buffered']
    #allocation3 [shape = 's32[1]{0}', space=sflag, size = 0x4, scoped, tag = 'scoped memory for tpu_custom_call.1']
    #allocation4 [shape = 's32[1]{0}', space=sflag, size = 0x4, scoped, tag = 'scoped memory for tpu_custom_call.1']
    #allocation5 [shape = 'u8[65536]{0}', space=vmem, size = 0x10000, scoped, tag = 'output window, operand 0, single buffered']
    %12 = vsyncpa [#allocation3], 0
    %13 = vsyncpa [#allocation4], 0
    // Predicated region
    $region2: #{tpu_custom_call.1} parent=1 // pred_check
      _
    $region3: #{tpu_custom_call.1} parent=1 // pred_check_branch
      %15 = sbr.rel (0) target = $region5
    $region4: #{tpu_custom_call.1} parent=1 // pred_region
      _
    $region5: #{tpu_custom_call.1} parent=1 // pred_fallthru
      _
    // Predicated region
    $region6: #{tpu_custom_call.1} parent=1 // pred_check
      _
    $region7: #{tpu_custom_call.1} parent=1 // pred_check_branch
      %17 = sbr.rel (0) target = $region9
    $region8: #{tpu_custom_call.1} parent=1 // pred_region
      _
    $region9: #{tpu_custom_call.1} parent=1 // pred_fallthru
      _
    // Predicated region
    $region10: #{tpu_custom_call.1} parent=1 // pred_check
      _
    $region11: #{tpu_custom_call.1} parent=1 // pred_check_branch
      %19 = sbr.rel (0) target = $region13
    $region12: #{tpu_custom_call.1} parent=1 // pred_region
      _
    $region13: #{tpu_custom_call.1} parent=1 // pred_fallthru
      _
    // Predicated region
    $region14: #{tpu_custom_call.1} parent=1 // pred_check
      _
    $region15: #{tpu_custom_call.1} parent=1 // pred_check_branch
      %21 = sbr.rel (0) target = $region17
    $region16: #{tpu_custom_call.1} parent=1 // pred_region
      _
    $region17: #{tpu_custom_call.1} parent=1 // pred_fallthru
      _
    // Predicated region
    $region18: #{tpu_custom_call.1} parent=1 // pred_check
      _
    $region19: #{tpu_custom_call.1} parent=1 // pred_check_branch
      %23 = sbr.rel (0) target = $region21
    $region20: #{tpu_custom_call.1} parent=1 // pred_region
      _
    $region21: #{tpu_custom_call.1} parent=1 // pred_fallthru
      _
    // Predicated region
    $region22: #{tpu_custom_call.1} parent=1 // pred_check
      _
    $region23: #{tpu_custom_call.1} parent=1 // pred_check_branch
      %25 = sbr.rel (0) target = $region25
    $region24: #{tpu_custom_call.1} parent=1 // pred_region
      %s27 = ssub.s32 1024, 1024
      %28 = vsyncadd [#allocation3], %s27
      %s29 = sshll.u32 [#allocation2], 4
      %s30 = int_to_ptr.vmem [resolvable:$true] %s29
      %35 = dma.hbm_to_vmem [thread:$0]  %s5, 1024, %s30, [#allocation3], 64, 64, 4
    $region25: #{tpu_custom_call.1} parent=1 // pred_fallthru
      _
    // Predicated region
    $region26: #{tpu_custom_call.1} parent=1 // pred_check
      _
    $region27: #{tpu_custom_call.1} parent=1 // pred_check_branch
      %37 = sbr.rel (0) target = $region29
    $region28: #{tpu_custom_call.1} parent=1 // pred_region
      _
    $region29: #{tpu_custom_call.1} parent=1 // pred_fallthru
      _
    // Predicated region
    $region30: #{tpu_custom_call.1} parent=1 // pred_check
      _
    $region31: #{tpu_custom_call.1} parent=1 // pred_check_branch
      %39 = sbr.rel (0) target = $region33
    $region32: #{tpu_custom_call.1} parent=1 // pred_region
      %40 = dma.done [#allocation3], 1024
    $region33: #{tpu_custom_call.1} parent=1 // pred_fallthru
      _
    %v42 = vld [vmem:[%s0] sm:$0xf]
    %v43 = vld [vmem:[%s0 + $0x4] sm:$0xf]
    %v44 = vld [vmem:[%s0 + $0x8] sm:$0xf]
    %v45 = vld [vmem:[%s0 + $0xc] sm:$0xf]
    %v46 = vld [vmem:[%s0 + $0x10] sm:$0xf]
    %v47 = vld [vmem:[%s0 + $0x14] sm:$0xf]
    %v48 = vld [vmem:[%s0 + $0x18] sm:$0xf]
    %v49 = vld [vmem:[%s0 + $0x1c] sm:$0xf]
    %v50 = vld [vmem:[%s0 + $0x20] sm:$0xf]
    %v51 = vld [vmem:[%s0 + $0x24] sm:$0xf]
    %v52 = vld [vmem:[%s0 + $0x28] sm:$0xf]
    %v53 = vld [vmem:[%s0 + $0x2c] sm:$0xf]
    %v54 = vld [vmem:[%s0 + $0x30] sm:$0xf]
    %v55 = vld [vmem:[%s0 + $0x34] sm:$0xf]
    %v56 = vld [vmem:[%s0 + $0x38] sm:$0xf]
    %v57 = vld [vmem:[%s0 + $0x3c] sm:$0xf]
    %v58 = vld [vmem:[%s1] sm:$0xf]
    %v59 = vld [vmem:[%s2] sm:$0x1]
    %v61 = vlaneseq
    %v62 = vshrl.u32 %v61, 7
    %v63 = vsub.s32 0, %v62
    %v64 = vrot.slane %v59, %v63
    %v82 = vunpack.c.l.b16 %v42
    %v83 = vunpack.c.l.b16 %v43
    %v84 = vunpack.c.l.b16 %v44
    %v85 = vunpack.c.l.b16 %v45
    %v86 = vunpack.c.l.b16 %v46
    %v87 = vunpack.c.l.b16 %v47
    %v88 = vunpack.c.l.b16 %v48
    %v89 = vunpack.c.l.b16 %v49
    %v90 = vunpack.c.l.b16 %v50
    %v91 = vunpack.c.l.b16 %v51
    %v92 = vunpack.c.l.b16 %v52
    %v93 = vunpack.c.l.b16 %v53
    %v94 = vunpack.c.l.b16 %v54
    %v95 = vunpack.c.l.b16 %v55
    %v96 = vunpack.c.l.b16 %v56
    %v97 = vunpack.c.l.b16 %v57
    %v98 = vpack.c.b16 %v83, %v82
    %v99 = vpack.c.b16 %v85, %v84
    %v100 = vpack.c.b16 %v87, %v86
    %v101 = vpack.c.b16 %v89, %v88
    %v102 = vpack.c.b16 %v91, %v90
    %v103 = vpack.c.b16 %v93, %v92
    %v104 = vpack.c.b16 %v95, %v94
    %v105 = vpack.c.b16 %v97, %v96
    %vm106 = vcmask 64512
    %v108 = vsel %vm106, %v98, 0
    %v111 = vsel %vm106, %v99, 0
    %v114 = vsel %vm106, %v100, 0
    %v117 = vsel %vm106, %v101, 0
    %v120 = vsel %vm106, %v102, 0
    %v123 = vsel %vm106, %v103, 0
    %v126 = vsel %vm106, %v104, 0
    %v129 = vsel %vm106, %v105, 0
    %vm131 = vcmask 1043456
    %v133 = vsel %vm131, %v58, 0
    %135 = vmatprep.subr.bf16.mxu0 0
    %136 = vmatpush1.bf16.msra.mxu0 0
    %137 = vmatprep.subr.bf16.mxu0 0
    %138 = vmatpush1.bf16.msra.mxu0 0
    %139 = vmatprep.subr.bf16.mxu0 0
    %140 = vmatpush1.bf16.msra.mxu0 0
    %141 = vmatprep.subr.bf16.mxu0 0
    %142 = vmatpush1.bf16.msra.mxu0 0
    %143 = vmatprep.subr.bf16.mxu0 0
    %144 = vmatpush1.bf16.msra.mxu0 0
    %145 = vmatprep.subr.bf16.mxu0 0
    %146 = vmatpush1.bf16.msra.mxu0 0
    %147 = vmatprep.subr.bf16.mxu0 0
    %148 = vmatpush1.bf16.msra.mxu0 0
    %149 = vmatprep.subr.bf16.mxu0 0
    %150 = vmatpush1.bf16.msra.mxu0 %v133
    %151 = vmatprep.subr.bf16.mxu0 0
    %152 = vmatpush2.bf16.msra.mxu0 0
    %153 = vmatprep.subr.bf16.mxu0 0
    %154 = vmatpush2.bf16.msra.mxu0 0
    %155 = vmatprep.subr.bf16.mxu0 0
    %156 = vmatpush2.bf16.msra.mxu0 0
    %157 = vmatprep.subr.bf16.mxu0 0
    %158 = vmatpush2.bf16.msra.mxu0 0
    %159 = vmatprep.subr.bf16.mxu0 0
    %160 = vmatpush2.bf16.msra.mxu0 0
    %161 = vmatprep.subr.bf16.mxu0 0
    %162 = vmatpush2.bf16.msra.mxu0 0
    %163 = vmatprep.subr.bf16.mxu0 0
    %164 = vmatpush2.bf16.msra.mxu0 0
    %165 = vmatprep.subr.bf16.mxu0 0
    %166 = vmatpush2.bf16.msra.mxu0 0
    %167 = vmatprep.mubr.bf16.mxu0 0
    %168 = vmatmul.mubr.bf16.gmra.mxu0 %v108
    %v169 = vpop.f32.mrf.mxu0
    %v170 = vadd.f32 %v64, %v169
    %v171 = vpop.f32.mrf.mxu0
    %v172 = vpop.f32.mrf.mxu0
    %v173 = vadd.f32 %v64, %v172
    %v174 = vpop.f32.mrf.mxu0
    %175 = vmatprep.mubr.bf16.mxu0 0
    %176 = vmatmul.mubr.bf16.gmra.mxu0 %v111
    %v177 = vpop.f32.mrf.mxu0
    %v178 = vadd.f32 %v64, %v177
    %v179 = vpop.f32.mrf.mxu0
    %v180 = vpop.f32.mrf.mxu0
    %v181 = vadd.f32 %v64, %v180
    %v182 = vpop.f32.mrf.mxu0
    %183 = vmatprep.mubr.bf16.mxu0 0
    %184 = vmatmul.mubr.bf16.gmra.mxu0 %v114
    %v185 = vpop.f32.mrf.mxu0
    %v186 = vadd.f32 %v64, %v185
    %v187 = vpop.f32.mrf.mxu0
    %v188 = vpop.f32.mrf.mxu0
    %v189 = vadd.f32 %v64, %v188
    %v190 = vpop.f32.mrf.mxu0
    %191 = vmatprep.mubr.bf16.mxu0 0
    %192 = vmatmul.mubr.bf16.gmra.mxu0 %v117
    %v193 = vpop.f32.mrf.mxu0
    %v194 = vadd.f32 %v64, %v193
    %v195 = vpop.f32.mrf.mxu0
    %v196 = vpop.f32.mrf.mxu0
    %v197 = vadd.f32 %v64, %v196
    %v198 = vpop.f32.mrf.mxu0
    %199 = vmatprep.mubr.bf16.mxu0 0
    %200 = vmatmul.mubr.bf16.gmra.mxu0 %v120
    %v201 = vpop.f32.mrf.mxu0
    %v202 = vadd.f32 %v64, %v201
    %v203 = vpop.f32.mrf.mxu0
    %v204 = vpop.f32.mrf.mxu0
    %v205 = vadd.f32 %v64, %v204
    %v206 = vpop.f32.mrf.mxu0
    %207 = vmatprep.mubr.bf16.mxu0 0
    %208 = vmatmul.mubr.bf16.gmra.mxu0 %v123
    %v209 = vpop.f32.mrf.mxu0
    %v210 = vadd.f32 %v64, %v209
    %v211 = vpop.f32.mrf.mxu0
    %v212 = vpop.f32.mrf.mxu0
    %v213 = vadd.f32 %v64, %v212
    %v214 = vpop.f32.mrf.mxu0
    %215 = vmatprep.mubr.bf16.mxu0 0
    %216 = vmatmul.mubr.bf16.gmra.mxu0 %v126
    %v217 = vpop.f32.mrf.mxu0
    %v218 = vadd.f32 %v64, %v217
    %v219 = vpop.f32.mrf.mxu0
    %v220 = vpop.f32.mrf.mxu0
    %v221 = vadd.f32 %v64, %v220
    %v222 = vpop.f32.mrf.mxu0
    %223 = vmatprep.mubr.bf16.mxu0 0
    %224 = vmatmul.mubr.bf16.gmra.mxu0 %v129
    %v225 = vpop.f32.mrf.mxu0
    %v226 = vadd.f32 %v64, %v225
    %v227 = vpop.f32.mrf.mxu0
    %v228 = vpop.f32.mrf.mxu0
    %v229 = vadd.f32 %v64, %v228
    %v230 = vpop.f32.mrf.mxu0
    %231 = vdwg.mxu0
    %v232 = vmax.f32 %v170, 0.0
    %v233 = vmax.f32 %v173, 0.0
    %v234 = vmax.f32 %v178, 0.0
    %v235 = vmax.f32 %v181, 0.0
    %v236 = vmax.f32 %v186, 0.0
    %v237 = vmax.f32 %v189, 0.0
    %v238 = vmax.f32 %v194, 0.0
    %v239 = vmax.f32 %v197, 0.0
    %v240 = vmax.f32 %v202, 0.0
    %v241 = vmax.f32 %v205, 0.0
    %v242 = vmax.f32 %v210, 0.0
    %v243 = vmax.f32 %v213, 0.0
    %v244 = vmax.f32 %v218, 0.0
    %v245 = vmax.f32 %v221, 0.0
    %v246 = vmax.f32 %v226, 0.0
    %v247 = vmax.f32 %v229, 0.0
    %v248 = vpack.c.bf16 %v233, %v232
    %v249 = vpack.c.bf16 %v235, %v234
    %v250 = vpack.c.bf16 %v237, %v236
    %v251 = vpack.c.bf16 %v239, %v238
    %v252 = vpack.c.bf16 %v241, %v240
    %v253 = vpack.c.bf16 %v243, %v242
    %v254 = vpack.c.bf16 %v245, %v244
    %v255 = vpack.c.bf16 %v247, %v246
    %v256 = vld [vmem:[%s3] sm:$0xf]
    %v257 = vld [vmem:[%s3 + $0x4] sm:$0xf]
    %v258 = vld [vmem:[%s3 + $0x8] sm:$0xf]
    %v259 = vld [vmem:[%s3 + $0xc] sm:$0xf]
    %v260 = vld [vmem:[%s3 + $0x10] sm:$0xf]
    %v261 = vld [vmem:[%s3 + $0x14] sm:$0xf]
    %v262 = vld [vmem:[%s3 + $0x18] sm:$0xf]
    %v263 = vld [vmem:[%s3 + $0x1c] sm:$0xf]
    %v264 = vld [vmem:[%s3 + $0x20] sm:$0xf]
    %v265 = vld [vmem:[%s3 + $0x24] sm:$0xf]
    %v266 = vld [vmem:[%s3 + $0x28] sm:$0xf]
    %v267 = vld [vmem:[%s3 + $0x2c] sm:$0xf]
    %v268 = vld [vmem:[%s3 + $0x30] sm:$0xf]
    %v269 = vld [vmem:[%s3 + $0x34] sm:$0xf]
    %v270 = vld [vmem:[%s3 + $0x38] sm:$0xf]
    %v271 = vld [vmem:[%s3 + $0x3c] sm:$0xf]
    %v272 = vld [vmem:[%s4] sm:$0x1]
    %v274 = vlaneseq
    %v275 = vshrl.u32 %v274, 7
    %v276 = vsub.s32 0, %v275
    %v277 = vrot.slane %v272, %v276
    %v295 = vunpack.c.l.b16 %v256
    %v296 = vunpack.c.l.b16 %v257
    %v297 = vunpack.c.l.b16 %v258
    %v298 = vunpack.c.l.b16 %v259
    %v299 = vunpack.c.l.b16 %v260
    %v300 = vunpack.c.l.b16 %v261
    %v301 = vunpack.c.l.b16 %v262
    %v302 = vunpack.c.l.b16 %v263
    %v303 = vunpack.c.l.b16 %v264
    %v304 = vunpack.c.l.b16 %v265
    %v305 = vunpack.c.l.b16 %v266
    %v306 = vunpack.c.l.b16 %v267
    %v307 = vunpack.c.l.b16 %v268
    %v308 = vunpack.c.l.b16 %v269
    %v309 = vunpack.c.l.b16 %v270
    %v310 = vunpack.c.l.b16 %v271
    %v311 = vpack.c.b16 %v296, %v295
    %v312 = vpack.c.b16 %v298, %v297
    %v313 = vpack.c.b16 %v300, %v299
    %v314 = vpack.c.b16 %v302, %v301
    %v315 = vpack.c.b16 %v304, %v303
    %v316 = vpack.c.b16 %v306, %v305
    %v317 = vpack.c.b16 %v308, %v307
    %v318 = vpack.c.b16 %v310, %v309
    %327 = vmatprep.subr.bf16.mxu0 0
    %328 = vmatpush1.bf16.msra.mxu0 %v318
    %329 = vmatprep.subr.bf16.mxu0 0
    %330 = vmatpush1.bf16.msra.mxu0 %v317
    %331 = vmatprep.subr.bf16.mxu0 0
    %332 = vmatpush1.bf16.msra.mxu0 %v316
    %333 = vmatprep.subr.bf16.mxu0 0
    %334 = vmatpush1.bf16.msra.mxu0 %v315
    %335 = vmatprep.subr.bf16.mxu0 0
    %336 = vmatpush1.bf16.msra.mxu0 %v314
    %337 = vmatprep.subr.bf16.mxu0 0
    %338 = vmatpush1.bf16.msra.mxu0 %v313
    %339 = vmatprep.subr.bf16.mxu0 0
    %340 = vmatpush1.bf16.msra.mxu0 %v312
    %341 = vmatprep.subr.bf16.mxu0 0
    %342 = vmatpush1.bf16.msra.mxu0 %v311
    %343 = vmatprep.subr.bf16.mxu0 0
    %344 = vmatpush2.bf16.msra.mxu0 0
    %345 = vmatprep.subr.bf16.mxu0 0
    %346 = vmatpush2.bf16.msra.mxu0 0
    %347 = vmatprep.subr.bf16.mxu0 0
    %348 = vmatpush2.bf16.msra.mxu0 0
    %349 = vmatprep.subr.bf16.mxu0 0
    %350 = vmatpush2.bf16.msra.mxu0 0
    %351 = vmatprep.subr.bf16.mxu0 0
    %352 = vmatpush2.bf16.msra.mxu0 0
    %353 = vmatprep.subr.bf16.mxu0 0
    %354 = vmatpush2.bf16.msra.mxu0 0
    %355 = vmatprep.subr.bf16.mxu0 0
    %356 = vmatpush2.bf16.msra.mxu0 0
    %357 = vmatprep.subr.bf16.mxu0 0
    %358 = vmatpush2.bf16.msra.mxu0 0
    %359 = vmatprep.mubr.bf16.mxu0 0
    %360 = vmatmul.mubr.bf16.gmra.mxu0 %v248
    %v361 = vpop.f32.mrf.mxu0
    %v362 = vadd.f32 %v277, %v361
    %v363 = vpop.f32.mrf.mxu0
    %v364 = vpop.f32.mrf.mxu0
    %v365 = vadd.f32 %v277, %v364
    %v366 = vpop.f32.mrf.mxu0
    %367 = vmatprep.mubr.bf16.mxu0 0
    %368 = vmatmul.mubr.bf16.gmra.mxu0 %v249
    %v369 = vpop.f32.mrf.mxu0
    %v370 = vadd.f32 %v277, %v369
    %v371 = vpop.f32.mrf.mxu0
    %v372 = vpop.f32.mrf.mxu0
    %v373 = vadd.f32 %v277, %v372
    %v374 = vpop.f32.mrf.mxu0
    %375 = vmatprep.mubr.bf16.mxu0 0
    %376 = vmatmul.mubr.bf16.gmra.mxu0 %v250
    %v377 = vpop.f32.mrf.mxu0
    %v378 = vadd.f32 %v277, %v377
    %v379 = vpop.f32.mrf.mxu0
    %v380 = vpop.f32.mrf.mxu0
    %v381 = vadd.f32 %v277, %v380
    %v382 = vpop.f32.mrf.mxu0
    %383 = vmatprep.mubr.bf16.mxu0 0
    %384 = vmatmul.mubr.bf16.gmra.mxu0 %v251
    %v385 = vpop.f32.mrf.mxu0
    %v386 = vadd.f32 %v277, %v385
    %v387 = vpop.f32.mrf.mxu0
    %v388 = vpop.f32.mrf.mxu0
    %v389 = vadd.f32 %v277, %v388
    %v390 = vpop.f32.mrf.mxu0
    %391 = vmatprep.mubr.bf16.mxu0 0
    %392 = vmatmul.mubr.bf16.gmra.mxu0 %v252
    %v393 = vpop.f32.mrf.mxu0
    %v394 = vadd.f32 %v277, %v393
    %v395 = vpop.f32.mrf.mxu0
    %v396 = vpop.f32.mrf.mxu0
    %v397 = vadd.f32 %v277, %v396
    %v398 = vpop.f32.mrf.mxu0
    %399 = vmatprep.mubr.bf16.mxu0 0
    %400 = vmatmul.mubr.bf16.gmra.mxu0 %v253
    %v401 = vpop.f32.mrf.mxu0
    %v402 = vadd.f32 %v277, %v401
    %v403 = vpop.f32.mrf.mxu0
    %v404 = vpop.f32.mrf.mxu0
    %v405 = vadd.f32 %v277, %v404
    %v406 = vpop.f32.mrf.mxu0
    %407 = vmatprep.mubr.bf16.mxu0 0
    %408 = vmatmul.mubr.bf16.gmra.mxu0 %v254
    %v409 = vpop.f32.mrf.mxu0
    %v410 = vadd.f32 %v277, %v409
    %v411 = vpop.f32.mrf.mxu0
    %v412 = vpop.f32.mrf.mxu0
    %v413 = vadd.f32 %v277, %v412
    %v414 = vpop.f32.mrf.mxu0
    %415 = vmatprep.mubr.bf16.mxu0 0
    %416 = vmatmul.mubr.bf16.gmra.mxu0 %v255
    %v417 = vpop.f32.mrf.mxu0
    %v418 = vadd.f32 %v277, %v417
    %v419 = vpop.f32.mrf.mxu0
    %v420 = vpop.f32.mrf.mxu0
    %v421 = vadd.f32 %v277, %v420
    %v422 = vpop.f32.mrf.mxu0
    %423 = vdwg.mxu0
    %v424 = vmax.f32 %v362, 0.0
    %v425 = vmax.f32 %v365, 0.0
    %v426 = vmax.f32 %v370, 0.0
    %v427 = vmax.f32 %v373, 0.0
    %v428 = vmax.f32 %v378, 0.0
    %v429 = vmax.f32 %v381, 0.0
    %v430 = vmax.f32 %v386, 0.0
    %v431 = vmax.f32 %v389, 0.0
    %v432 = vmax.f32 %v394, 0.0
    %v433 = vmax.f32 %v397, 0.0
    %v434 = vmax.f32 %v402, 0.0
    %v435 = vmax.f32 %v405, 0.0
    %v436 = vmax.f32 %v410, 0.0
    %v437 = vmax.f32 %v413, 0.0
    %v438 = vmax.f32 %v418, 0.0
    %v439 = vmax.f32 %v421, 0.0
    %v440 = vpack.c.bf16 %v425, %v424
    %v441 = vpack.c.bf16 %v427, %v426
    %v442 = vpack.c.bf16 %v429, %v428
    %v443 = vpack.c.bf16 %v431, %v430
    %v444 = vpack.c.bf16 %v433, %v432
    %v445 = vpack.c.bf16 %v435, %v434
    %v446 = vpack.c.bf16 %v437, %v436
    %v447 = vpack.c.bf16 %v439, %v438
    %v448 = vld [vmem:[#allocation2] sm:$0xf]
    %v449 = vld [vmem:[#allocation2 + $0x4] sm:$0xf]
    %v450 = vld [vmem:[#allocation2 + $0x8] sm:$0xf]
    %v451 = vld [vmem:[#allocation2 + $0xc] sm:$0xf]
    %v452 = vld [vmem:[#allocation2 + $0x10] sm:$0xf]
    %v453 = vld [vmem:[#allocation2 + $0x14] sm:$0xf]
    %v454 = vld [vmem:[#allocation2 + $0x18] sm:$0xf]
    %v455 = vld [vmem:[#allocation2 + $0x1c] sm:$0xf]
    %v456 = vld [vmem:[#allocation2 + $0x20] sm:$0xf]
    %v457 = vld [vmem:[#allocation2 + $0x24] sm:$0xf]
    %v458 = vld [vmem:[#allocation2 + $0x28] sm:$0xf]
    %v459 = vld [vmem:[#allocation2 + $0x2c] sm:$0xf]
    %v460 = vld [vmem:[#allocation2 + $0x30] sm:$0xf]
    %v461 = vld [vmem:[#allocation2 + $0x34] sm:$0xf]
    %v462 = vld [vmem:[#allocation2 + $0x38] sm:$0xf]
    %v463 = vld [vmem:[#allocation2 + $0x3c] sm:$0xf]
    %v464 = vld [vmem:[%s6] sm:$0x1]
    %v466 = vlaneseq
    %v467 = vshrl.u32 %v466, 7
    %v468 = vsub.s32 0, %v467
    %v469 = vrot.slane %v464, %v468
    %v487 = vunpack.c.l.b16 %v448
    %v488 = vunpack.c.l.b16 %v449
    %v489 = vunpack.c.l.b16 %v450
    %v490 = vunpack.c.l.b16 %v451
    %v491 = vunpack.c.l.b16 %v452
    %v492 = vunpack.c.l.b16 %v453
    %v493 = vunpack.c.l.b16 %v454
    %v494 = vunpack.c.l.b16 %v455
    %v495 = vunpack.c.l.b16 %v456
    %v496 = vunpack.c.l.b16 %v457
    %v497 = vunpack.c.l.b16 %v458
    %v498 = vunpack.c.l.b16 %v459
    %v499 = vunpack.c.l.b16 %v460
    %v500 = vunpack.c.l.b16 %v461
    %v501 = vunpack.c.l.b16 %v462
    %v502 = vunpack.c.l.b16 %v463
    %v503 = vpack.c.b16 %v488, %v487
    %v504 = vpack.c.b16 %v490, %v489
    %v505 = vpack.c.b16 %v492, %v491
    %v506 = vpack.c.b16 %v494, %v493
    %v507 = vpack.c.b16 %v496, %v495
    %v508 = vpack.c.b16 %v498, %v497
    %v509 = vpack.c.b16 %v500, %v499
    %v510 = vpack.c.b16 %v502, %v501
    %519 = vmatprep.subr.bf16.mxu0 0
    %520 = vmatpush1.bf16.msra.mxu0 %v510
    %521 = vmatprep.subr.bf16.mxu0 0
    %522 = vmatpush1.bf16.msra.mxu0 %v509
    %523 = vmatprep.subr.bf16.mxu0 0
    %524 = vmatpush1.bf16.msra.mxu0 %v508
    %525 = vmatprep.subr.bf16.mxu0 0
    %526 = vmatpush1.bf16.msra.mxu0 %v507
    %527 = vmatprep.subr.bf16.mxu0 0
    %528 = vmatpush1.bf16.msra.mxu0 %v506
    %529 = vmatprep.subr.bf16.mxu0 0
    %530 = vmatpush1.bf16.msra.mxu0 %v505
    %531 = vmatprep.subr.bf16.mxu0 0
    %532 = vmatpush1.bf16.msra.mxu0 %v504
    %533 = vmatprep.subr.bf16.mxu0 0
    %534 = vmatpush1.bf16.msra.mxu0 %v503
    %535 = vmatprep.subr.bf16.mxu0 0
    %536 = vmatpush2.bf16.msra.mxu0 0
    %537 = vmatprep.subr.bf16.mxu0 0
    %538 = vmatpush2.bf16.msra.mxu0 0
    %539 = vmatprep.subr.bf16.mxu0 0
    %540 = vmatpush2.bf16.msra.mxu0 0
    %541 = vmatprep.subr.bf16.mxu0 0
    %542 = vmatpush2.bf16.msra.mxu0 0
    %543 = vmatprep.subr.bf16.mxu0 0
    %544 = vmatpush2.bf16.msra.mxu0 0
    %545 = vmatprep.subr.bf16.mxu0 0
    %546 = vmatpush2.bf16.msra.mxu0 0
    %547 = vmatprep.subr.bf16.mxu0 0
    %548 = vmatpush2.bf16.msra.mxu0 0
    %549 = vmatprep.subr.bf16.mxu0 0
    %550 = vmatpush2.bf16.msra.mxu0 0
    %551 = vmatprep.mubr.bf16.mxu0 0
    %552 = vmatmul.mubr.bf16.gmra.mxu0 %v440
    %v553 = vpop.f32.mrf.mxu0
    %v554 = vadd.f32 %v469, %v553
    %v555 = vpop.f32.mrf.mxu0
    %v556 = vpop.f32.mrf.mxu0
    %v557 = vadd.f32 %v469, %v556
    %v558 = vpop.f32.mrf.mxu0
    %559 = vmatprep.mubr.bf16.mxu0 0
    %560 = vmatmul.mubr.bf16.gmra.mxu0 %v441
    %v561 = vpop.f32.mrf.mxu0
    %v562 = vadd.f32 %v469, %v561
    %v563 = vpop.f32.mrf.mxu0
    %v564 = vpop.f32.mrf.mxu0
    %v565 = vadd.f32 %v469, %v564
    %v566 = vpop.f32.mrf.mxu0
    %567 = vmatprep.mubr.bf16.mxu0 0
    %568 = vmatmul.mubr.bf16.gmra.mxu0 %v442
    %v569 = vpop.f32.mrf.mxu0
    %v570 = vadd.f32 %v469, %v569
    %v571 = vpop.f32.mrf.mxu0
    %v572 = vpop.f32.mrf.mxu0
    %v573 = vadd.f32 %v469, %v572
    %v574 = vpop.f32.mrf.mxu0
    %575 = vmatprep.mubr.bf16.mxu0 0
    %576 = vmatmul.mubr.bf16.gmra.mxu0 %v443
    %v577 = vpop.f32.mrf.mxu0
    %v578 = vadd.f32 %v469, %v577
    %v579 = vpop.f32.mrf.mxu0
    %v580 = vpop.f32.mrf.mxu0
    %v581 = vadd.f32 %v469, %v580
    %v582 = vpop.f32.mrf.mxu0
    %583 = vmatprep.mubr.bf16.mxu0 0
    %584 = vmatmul.mubr.bf16.gmra.mxu0 %v444
    %v585 = vpop.f32.mrf.mxu0
    %v586 = vadd.f32 %v469, %v585
    %v587 = vpop.f32.mrf.mxu0
    %v588 = vpop.f32.mrf.mxu0
    %v589 = vadd.f32 %v469, %v588
    %v590 = vpop.f32.mrf.mxu0
    %591 = vmatprep.mubr.bf16.mxu0 0
    %592 = vmatmul.mubr.bf16.gmra.mxu0 %v445
    %v593 = vpop.f32.mrf.mxu0
    %v594 = vadd.f32 %v469, %v593
    %v595 = vpop.f32.mrf.mxu0
    %v596 = vpop.f32.mrf.mxu0
    %v597 = vadd.f32 %v469, %v596
    %v598 = vpop.f32.mrf.mxu0
    %599 = vmatprep.mubr.bf16.mxu0 0
    %600 = vmatmul.mubr.bf16.gmra.mxu0 %v446
    %v601 = vpop.f32.mrf.mxu0
    %v602 = vadd.f32 %v469, %v601
    %v603 = vpop.f32.mrf.mxu0
    %v604 = vpop.f32.mrf.mxu0
    %v605 = vadd.f32 %v469, %v604
    %v606 = vpop.f32.mrf.mxu0
    %607 = vmatprep.mubr.bf16.mxu0 0
    %608 = vmatmul.mubr.bf16.gmra.mxu0 %v447
    %v609 = vpop.f32.mrf.mxu0
    %v610 = vadd.f32 %v469, %v609
    %v611 = vpop.f32.mrf.mxu0
    %v612 = vpop.f32.mrf.mxu0
    %v613 = vadd.f32 %v469, %v612
    %v614 = vpop.f32.mrf.mxu0
    %615 = vdwg.mxu0
    %616 = vst [vmem:[#allocation5] sm:$0xff] %v554
    %617 = vst [vmem:[#allocation5 + $0x8] sm:$0xff] %v557
    %618 = vst [vmem:[#allocation5 + $0x10] sm:$0xff] %v562
    %619 = vst [vmem:[#allocation5 + $0x18] sm:$0xff] %v565
    %620 = vst [vmem:[#allocation5 + $0x20] sm:$0xff] %v570
    %621 = vst [vmem:[#allocation5 + $0x28] sm:$0xff] %v573
    %622 = vst [vmem:[#allocation5 + $0x30] sm:$0xff] %v578
    %623 = vst [vmem:[#allocation5 + $0x38] sm:$0xff] %v581
    %624 = vst [vmem:[#allocation5 + $0x40] sm:$0xff] %v586
    %625 = vst [vmem:[#allocation5 + $0x48] sm:$0xff] %v589
    %626 = vst [vmem:[#allocation5 + $0x50] sm:$0xff] %v594
    %627 = vst [vmem:[#allocation5 + $0x58] sm:$0xff] %v597
    %628 = vst [vmem:[#allocation5 + $0x60] sm:$0xff] %v602
    %629 = vst [vmem:[#allocation5 + $0x68] sm:$0xff] %v605
    %630 = vst [vmem:[#allocation5 + $0x70] sm:$0xff] %v610
    %631 = vst [vmem:[#allocation5 + $0x78] sm:$0xff] %v613
    // Predicated region
    $region34: #{tpu_custom_call.1} parent=1 // pred_check
      _
    $region35: #{tpu_custom_call.1} parent=1 // pred_check_branch
      %633 = sbr.rel (0) target = $region37
    $region36: #{tpu_custom_call.1} parent=1 // pred_region
      %s635 = ssub.s32 2048, 2048
      %636 = vsyncadd [#allocation4], %s635
      %s637 = sshll.u32 [#allocation5], 4
      %s638 = int_to_ptr.vmem [resolvable:$true] %s637
      %643 = dma.vmem_to_hbm [thread:$0]  %s638, 2048, %s7, [#allocation4], 128, 128, 8
    $region37: #{tpu_custom_call.1} parent=1 // pred_fallthru
      _
    // Predicated region
    $region38: #{tpu_custom_call.1} parent=1 // pred_check
      _
    $region39: #{tpu_custom_call.1} parent=1 // pred_check_branch
      %645 = sbr.rel (0) target = $region41
    $region40: #{tpu_custom_call.1} parent=1 // pred_region
      %646 = dma.done [#allocation4], 2048
    $region41: #{tpu_custom_call.1} parent=1 // pred_fallthru
      _
    %647 = vsyncpa [#allocation3], 1
    %648 = vsyncpa [#allocation4], 1

</llo_original>
